<compile_context>
chip_gen: v6e
topology: v6e:2x2x1
jax: 0.10.0
libtpu: 0.0.40
codegen_flags: <defaults>
</compile_context>

<pallas_src>
import functools
import math

import jax
import jax.numpy as jnp
from jax import lax
from jax.experimental import pallas as pl
from jax.experimental.pallas import tpu as pltpu


def _round_up(a, b):
    return ((a + b - 1) // b) * b


def _voxel_kernel(x_ref, fparts_ref, o_ref, *, Ns, inv_hs0, remap_needed):
    """Remap + clamp + 3-D voxel gather for one tile of TM points.

    x_ref:      (3, TM)        f32  point coordinates, points on lanes (VMEM)
    fparts_ref: (3*N2, N0*N1)  bf16 bf16x3 split of f.reshape(N0*N1, N2).T
                                    (VMEM, resident across grid steps)
    o_ref:      (1, TM)        f32  gathered voxel values (VMEM)
    """
    N0, N1, N2 = Ns
    R = N0 * N1
    TM = x_ref.shape[1]

    # --- remap + clamp all three coordinate rows in a single (3, TM) pass ---
    v = x_ref[...]                                                    # (3, TM) f32
    if remap_needed:
        v = (v + 1.0) * inv_hs0                                       # folded divide
    d_iota = lax.broadcasted_iota(jnp.int32, (3, TM), 0)
    ub = jnp.where(d_iota == 0, float(N0 - 1),
                   jnp.where(d_iota == 1, float(N1 - 1), float(N2 - 1)))
    # clamp (float) then truncate toward zero == torch.clamp(...).long()
    idx = jnp.clip(v, 0.0, ub).astype(jnp.int32)                      # (3, TM) int32

    i0 = idx[0:1, :]
    i1 = idx[1:2, :]
    i2 = idx[2:3, :]
    row = i0 * N1 + i1                                                # (1, TM) int32 (exact)

    # --- stage 1: rows[c, p] = f[i0_p, i1_p, c] via one-hot contraction on the MXU ---
    r_iota = lax.broadcasted_iota(jnp.int32, (R, TM), 0)
    oneh = (r_iota == row).astype(jnp.bfloat16)                       # (R, TM), no f32 select
    parts = jnp.dot(fparts_ref[...], oneh,
                    preferred_element_type=jnp.float32)               # (3*N2, TM)
    # hi + mid + lo reconstructs the gathered f32 values (exact up to split rounding).
    rows = parts[0:N2, :] + parts[N2:2 * N2, :] + parts[2 * N2:3 * N2, :]

    # --- stage 2: pick c == i2_p (N2-wide select + short sublane reduce) ---
    c_iota = lax.broadcasted_iota(jnp.int32, (N2, TM), 0)
    picked = jnp.where(c_iota == i2, rows, 0.0)                       # (N2, TM)
    o_ref[...] = jnp.sum(picked, axis=0, keepdims=True)               # (1, TM)


class ModelVoxel:
    """JAX/Pallas port of the PyTorch ModelVoxel (3-D grid; remap adds a 3-vector)."""

    _TM_TARGET = 4096   # points per grid step (multiple of 128); capped for >=2 steps

    def __init__(self, f=None, Ns=(16, 16, 16), Ls=2.0, remap_needed=True):
        self.remap_needed = remap_needed
        if f is None:
            self.Ns = tuple(int(n) for n in Ns)
            self.f = jax.random.normal(jax.random.PRNGKey(1), self.Ns, jnp.float32)
        else:
            self.f = jnp.asarray(f, jnp.float32)
            self.Ns = tuple(self.f.shape)
        assert len(self.Ns) == 3, "kernel implements the 3-D voxel grid case"
        self.Ls = float(Ls)
        # NOTE: like the PyTorch module, remap uses hs[0] for *every* coordinate.
        self.hs = self.Ls / (jnp.asarray(self.Ns, jnp.float32) - 1.0)
        # bf16x3 split of f, computed once (review item #3).
        self._fparts = self._make_fparts()
        # Per-input-shape cache of (pallas_call + jitted forward).
        self._cache = {}

    def _make_fparts(self):
        """bf16x3 split of f.reshape(N0*N1, N2).T -> (3*N2, N0*N1)."""
        N0, N1, N2 = self.Ns
        fT = self.f.reshape(N0 * N1, N2).T.astype(jnp.float32)          # (N2, N0*N1)
        hi = fT.astype(jnp.bfloat16)
        r1 = fT - hi.astype(jnp.float32)
        mid = r1.astype(jnp.bfloat16)
        lo = (r1 - mid.astype(jnp.float32)).astype(jnp.bfloat16)
        return jnp.concatenate([hi, mid, lo], axis=0)                   # (3*N2, N0*N1)

    def _build(self, sh):
        """Build a jitted forward (incl. pallas_call) specialized to input shape `sh`."""
        D = sh[-1]
        assert D == 3, "remap adds a 3-vector -> last point dimension must be 3"
        N0, N1, N2 = self.Ns
        R = N0 * N1
        M = math.prod(sh[:-1])
        assert M >= 1

        # TM selection: big enough to amortize the ~0.35us/step overhead, but
        # capped so MP // TM >= 2 when M allows (lets "parallel" shard across
        # the two v7x TensorCores).  Transients at TM=4096, R=256 are ~10 MiB
        # -> fits the 32 MiB default scoped VMEM on v5e/v6e/v7x.
        M128 = _round_up(M, 128)
        if M128 <= 256:
            TM = M128                                   # tiny input: single step
        else:
            TM = min(self._TM_TARGET, _round_up(M128 // 2, 128))
        MP = _round_up(M128, TM)
        steps = MP // TM

        inv_hs0 = (N0 - 1) / self.Ls                    # 1 / hs[0] (constant-folded)
        kern = functools.partial(_voxel_kernel, Ns=self.Ns, inv_hs0=inv_hs0,
                                 remap_needed=self.remap_needed)

        cost = pl.CostEstimate(
            flops=2 * MP * (3 * N2) * R,                # one-hot contraction MACs
            transcendentals=0,
            bytes_accessed=(3 * MP + MP) * 4 + (3 * N2) * R * 2,
        )

        call = pl.pallas_call(
            kern,
            out_shape=jax.ShapeDtypeStruct((1, MP), jnp.float32),
            grid=(steps,),
            in_specs=[
                pl.BlockSpec((3, TM), lambda i: (0, i)),            # point tile
                pl.BlockSpec((3 * N2, R), lambda i: (0, 0)),        # f, VMEM-resident
            ],
            out_specs=pl.BlockSpec((1, TM), lambda i: (0, i)),      # lane-dense out
            compiler_params=pltpu.CompilerParams(
                dimension_semantics=("parallel",)),
            cost_estimate=cost,
        )

        @jax.jit
        def fwd(x, fparts):
            # Transpose/pad fused under the same jit as the kernel (no extra
            # eager HBM round trip for the (M,3)->(3,M) layout change).
            xT = x.reshape(M, D).T                                   # (3, M)
            if MP != M:
                xT = jnp.pad(xT, ((0, 0), (0, MP - M)))
            out = call(xT, fparts)
            return out[0, :M].reshape(sh[:-1])

        return fwd

    def __call__(self, x):
        x = jnp.asarray(x, jnp.float32)
        fn = self._cache.get(x.shape)
        if fn is None:
            fn = self._build(x.shape)
            self._cache[x.shape] = fn
        return fn(x, self._fparts)


def _ref_forward(x, f, Ns, Ls, remap_needed=True):
    """Plain-JAX reference reproducing the PyTorch forward (same folded remap)."""
    if remap_needed:
        x = (x + 1.0) * ((Ns[0] - 1) / Ls)
    sh = x.shape
    idx = x.reshape(-1, sh[-1])
    cols = [jnp.clip(idx[:, i], 0.0, Ns[i] - 1).astype(jnp.int32) for i in range(len(Ns))]
    ans = f[tuple(cols)]
    return ans.reshape(sh[:-1])


if __name__ == "__main__":
    key = jax.random.PRNGKey(0)
    model = ModelVoxel(Ns=(16, 16, 16), Ls=2.0, remap_needed=True)

    # Small case (canonical usage): batch=2, points=8, D=3.
    x_small = jax.random.uniform(key, (2, 8, 3), jnp.float32, minval=-1.0, maxval=1.0)
    out_small = jax.block_until_ready(model(x_small))
    ref_small = _ref_forward(x_small, model.f, model.Ns, model.Ls, remap_needed=True)
    assert out_small.shape == (2, 8), out_small.shape
    assert jnp.allclose(out_small, ref_small, atol=1e-5, rtol=1e-5)

    # Larger case: exercises M-tiling / padding / multi-step parallel grid.
    k2 = jax.random.PRNGKey(2)
    x_big = jax.random.uniform(k2, (4, 1000, 3), jnp.float32, minval=-1.2, maxval=1.2)
    out_big = jax.block_until_ready(model(x_big))
    ref_big = _ref_forward(x_big, model.f, model.Ns, model.Ls, remap_needed=True)
    assert out_big.shape == (4, 1000), out_big.shape
    assert jnp.allclose(out_big, ref_big, atol=1e-5, rtol=1e-5)

    # Repeated call hits the cached jitted path (no rebuild / retrace).
    out_small2 = jax.block_until_ready(model(x_small))
    assert jnp.allclose(out_small2, ref_small, atol=1e-5, rtol=1e-5)

    print("KERNEL_OK")
</pallas_src>

<mosaic_0001>
module attributes {stable_mosaic.version = 11 : i64} {
  func.func @_voxel_kernel(%arg0: i32, %arg1: memref<3x128xf32, #tpu.memory_space<vmem>>, %arg2: memref<48x256xbf16, #tpu.memory_space<vmem>>, %arg3: memref<1x128xf32, #tpu.memory_space<vmem>>) attributes {dimension_semantics = [#tpu.dimension_semantics<parallel>], iteration_bounds = array<i64: 1>, scalar_prefetch = 0 : i64, scratch_operands = 0 : i64, tpu.core_type = #tpu.core_type<tc>, window_params = [{transform_indices = @transform_0, window_bounds = array<i64: 3, 128>}, {pipeline_mode = #tpu.pipeline_mode<synchronous>, transform_indices = @transform_1, window_bounds = array<i64: 48, 256>}, {transform_indices = @transform_2, window_bounds = array<i64: 1, 128>}]} {
    %c0 = arith.constant 0 : index
    %c0_0 = arith.constant 0 : index
    %0 = vector.load %arg1[%c0, %c0_0] : memref<3x128xf32, #tpu.memory_space<vmem>>, vector<3x128xf32>
    %cst = arith.constant 1.000000e+00 : f32
    %1 = vector.broadcast %cst : f32 to vector<3x128xf32>
    %2 = arith.addf %0, %1 : vector<3x128xf32>
    %cst_1 = arith.constant 7.500000e+00 : f32
    %3 = vector.broadcast %cst_1 : f32 to vector<3x128xf32>
    %4 = arith.mulf %2, %3 : vector<3x128xf32>
    %5 = tpu.iota {dimensions = array<i32: 0>} : vector<3x128xi32>
    %c0_i32 = arith.constant 0 : i32
    %6 = vector.broadcast %c0_i32 : i32 to vector<3x128xi32>
    %7 = arith.cmpi eq, %5, %6 : vector<3x128xi32>
    %c1_i32 = arith.constant 1 : i32
    %8 = vector.broadcast %c1_i32 : i32 to vector<3x128xi32>
    %9 = arith.cmpi eq, %5, %8 : vector<3x128xi32>
    %cst_2 = arith.constant 1.500000e+01 : f32
    %cst_3 = arith.constant 1.500000e+01 : f32
    %10 = vector.broadcast %cst_2 : f32 to vector<3x128xf32>
    %11 = vector.broadcast %cst_3 : f32 to vector<3x128xf32>
    %12 = arith.select %9, %10, %11 : vector<3x128xi1>, vector<3x128xf32>
    %cst_4 = arith.constant 1.500000e+01 : f32
    %13 = vector.broadcast %cst_4 : f32 to vector<3x128xf32>
    %14 = arith.select %7, %13, %12 : vector<3x128xi1>, vector<3x128xf32>
    %cst_5 = arith.constant 0.000000e+00 : f32
    %15 = vector.broadcast %cst_5 : f32 to vector<3x128xf32>
    %16 = arith.maximumf %15, %4 : vector<3x128xf32>
    %17 = arith.minimumf %14, %16 : vector<3x128xf32>
    %18 = arith.fptosi %17 : vector<3x128xf32> to vector<3x128xi32>
    %19 = vector.extract_strided_slice %18 {offsets = [0, 0], sizes = [1, 128], strides = [1, 1]} : vector<3x128xi32> to vector<1x128xi32>
    %20 = vector.extract_strided_slice %18 {offsets = [1, 0], sizes = [1, 128], strides = [1, 1]} : vector<3x128xi32> to vector<1x128xi32>
    %21 = vector.extract_strided_slice %18 {offsets = [2, 0], sizes = [1, 128], strides = [1, 1]} : vector<3x128xi32> to vector<1x128xi32>
    %c16_i32 = arith.constant 16 : i32
    %22 = vector.broadcast %c16_i32 : i32 to vector<1x128xi32>
    %23 = arith.muli %19, %22 : vector<1x128xi32>
    %24 = arith.addi %23, %20 : vector<1x128xi32>
    %25 = tpu.iota {dimensions = array<i32: 0>} : vector<256x128xi32>
    %26 = vector.broadcast %24 : vector<1x128xi32> to vector<256x128xi32>
    %27 = arith.cmpi eq, %25, %26 : vector<256x128xi32>
    %28 = arith.extui %27 : vector<256x128xi1> to vector<256x128xi32>
    %29 = arith.sitofp %28 : vector<256x128xi32> to vector<256x128xf32>
    %30 = arith.truncf %29 : vector<256x128xf32> to vector<256x128xbf16>
    %c0_6 = arith.constant 0 : index
    %c0_7 = arith.constant 0 : index
    %31 = vector.load %arg2[%c0_6, %c0_7] : memref<48x256xbf16, #tpu.memory_space<vmem>>, vector<48x256xbf16>
    %cst_8 = arith.constant dense<0.000000e+00> : vector<48x128xf32>
    %32 = tpu.matmul %31, %30, %cst_8 {dimension_numbers = #tpu.dot_dimension_numbers<[1], [0], [0], [1], [0, 0, 1, 1], [], []>} : vector<48x256xbf16>, vector<256x128xbf16>, vector<48x128xf32> -> vector<48x128xf32>
    %33 = vector.extract_strided_slice %32 {offsets = [0, 0], sizes = [16, 128], strides = [1, 1]} : vector<48x128xf32> to vector<16x128xf32>
    %34 = vector.extract_strided_slice %32 {offsets = [16, 0], sizes = [16, 128], strides = [1, 1]} : vector<48x128xf32> to vector<16x128xf32>
    %35 = arith.addf %33, %34 : vector<16x128xf32>
    %36 = vector.extract_strided_slice %32 {offsets = [32, 0], sizes = [16, 128], strides = [1, 1]} : vector<48x128xf32> to vector<16x128xf32>
    %37 = arith.addf %35, %36 : vector<16x128xf32>
    %38 = tpu.iota {dimensions = array<i32: 0>} : vector<16x128xi32>
    %39 = vector.broadcast %21 : vector<1x128xi32> to vector<16x128xi32>
    %40 = arith.cmpi eq, %38, %39 : vector<16x128xi32>
    %cst_9 = arith.constant 0.000000e+00 : f32
    %41 = vector.broadcast %cst_9 : f32 to vector<16x128xf32>
    %42 = arith.select %40, %37, %41 : vector<16x128xi1>, vector<16x128xf32>
    %cst_10 = arith.constant dense<0.000000e+00> : vector<128xf32>
    %43 = vector.multi_reduction <add>, %42, %cst_10 [0] : vector<16x128xf32> to vector<128xf32>
    %44 = vector.shape_cast %43 : vector<128xf32> to vector<1x128xf32>
    %c0_11 = arith.constant 0 : index
    %c0_12 = arith.constant 0 : index
    %45 = vector.load %arg3[%c0_11, %c0_12] : memref<1x128xf32, #tpu.memory_space<vmem>>, vector<1x128xf32>
    tpu.vector_store %arg3[%c0_11, %c0_12], %44 {strides = array<i32>} : memref<1x128xf32, #tpu.memory_space<vmem>>, vector<1x128xf32>,
    return
  }
  func.func @transform_0(%arg0: i32) -> (i32, i32) {
    %c0_i32 = arith.constant 0 : i32
    %c0_i32_0 = arith.constant 0 : i32
    return %c0_i32, %arg0 : i32, i32
  }
  func.func @transform_1(%arg0: i32) -> (i32, i32) {
    %c0_i32 = arith.constant 0 : i32
    %c0_i32_0 = arith.constant 0 : i32
    %c0_i32_1 = arith.constant 0 : i32
    return %c0_i32, %c0_i32_0 : i32, i32
  }
  func.func @transform_2(%arg0: i32) -> (i32, i32) {
    %c0_i32 = arith.constant 0 : i32
    %c0_i32_0 = arith.constant 0 : i32
    return %c0_i32, %arg0 : i32, i32
  }
}

</mosaic_0001>

<llo_original>
// kernel: squeeze.1
$region0: #{squeeze.1}
  %s0 = inlined_call_operand.vmem [shape: f32[16], index: 0, kind: input, shape index: {}]
  %s1 = inlined_call_operand.hbm [shape: f32[2,8], index: 1, kind: output, shape index: {}]
  $region1: #{squeeze.1} parent=0
    #allocation0 [shape = 'u8[1024]{0}', space=vmem, size = 0x400, scoped, tag = 'operand span for operand 1']
    #allocation1 [shape = 's32[1]{0}', space=sflag, size = 0x4, scoped, tag = 'scoped memory for squeeze.1']
    #allocation2 [shape = 'u8[4096]{0}', space=vmem, size = 0x1000, scoped, tag = 'scoped mem for output reshape']
    #allocation3 [shape = 'u8[4096]{0}', space=vmem, size = 0x1000, scoped, tag = 'scoped mem for input reshape']
    %2 = vsyncpa [#allocation1], 0
    %s4 = sshll.u32 1, 1
    %s5 = ssub.s32 %s4, 1
    %v6 = vld [vmem:[%s0] sm:%s5]
    %7 = vst [vmem:[#allocation3] sm:%s5] %v6
    %v8 = vld [vmem:[#allocation3] sm:$0x1]
    %vm9 = vcmask 64512
    %10 = vst.msk [vmem:[#allocation2] sm:$0x1] %vm9, %v8
    %v11 = vld [vmem:[#allocation3] sm:$0x1]
    %12 = vrot.lane.b32.xlu0 %v11, 120
    %v13 = vpop.permute.xlu0 %12
    %vm14 = vcmask 64512
    %s15 = scalar_lea.vmem [#allocation2], 1
    %16 = vst.msk [vmem:[%s15] sm:$0x1] %vm14, %v13
    %s18 = sshll.u32 1, 2
    %s19 = ssub.s32 %s18, 1
    %v21 = vld [vmem:[#allocation2] sm:%s19]
    %s22 = sshll.u32 1, 2
    %s23 = ssub.s32 %s22, 1
    %24 = vst [vmem:[#allocation0] sm:%s23] %v21
    %s26 = ssub.s32 32, 32
    %27 = vsyncadd [#allocation1], %s26
    %s29 = sshll.u32 [#allocation0], 4
    %s30 = int_to_ptr.vmem [resolvable:$true] %s29
    %32 = dma.vmem_to_hbm [thread:$0]  %s30, 32, %s1, [#allocation1]
    %33 = dma.done [#allocation1], 32
    %34 = vsyncpa [#allocation1], 1

// kernel: fwd.1
$region0: #{fwd.1}
  #allocation0 [shape = 'u32[]', space=smem, size = 0x4, offset = 0x4, fixed_abs, tag = 'smem constant byte address 0x4 - core index']
  #allocation1 [shape = 'u32[144,128]{1,0:T(1,128)}', space=vmem, size = 0x12000, scoped, tag = 'internal scratch']
  %s0 = inlined_call_operand.vmem [shape: f32[3,128], index: 0, kind: input, shape index: {}]
  %s1 = inlined_call_operand.hbm [shape: bf16[48,256], index: 1, kind: input, shape index: {}]
  %s2 = inlined_call_operand.vmem [shape: f32[1,128], index: 2, kind: output, shape index: {}]
  %s3 = sld [smem:[#allocation0]]
  $region22: #{fwd.1} parent=0
    _
  %s5 = ssub.s32 1, %s3
  %s6 = scalar_select 0, %s5, %s3
  $region1: #{fwd.1} parent=0
    #allocation2 [shape = 'u8[24576]{0}', space=vmem, size = 0x6000, scoped, tag = 'input window, operand 1, single buffered']
    #allocation3 [shape = 's32[1]{0}', space=sflag, size = 0x4, scoped, tag = 'scoped memory for fwd.1']
    %7 = vsyncpa [#allocation3], 0
    // Predicated region
    $region2: #{fwd.1} parent=1 // pred_check
      _
    $region3: #{fwd.1} parent=1 // pred_check_branch
      %9 = sbr.rel (0) target = $region5
    $region4: #{fwd.1} parent=1 // pred_region
      _
    $region5: #{fwd.1} parent=1 // pred_fallthru
      _
    // Predicated region
    $region6: #{fwd.1} parent=1 // pred_check
      _
    $region7: #{fwd.1} parent=1 // pred_check_branch
      %11 = sbr.rel (0) target = $region9
    $region8: #{fwd.1} parent=1 // pred_region
      %s13 = ssub.s32 768, 768
      %14 = vsyncadd [#allocation3], %s13
      %s15 = sshll.u32 [#allocation2], 4
      %s16 = int_to_ptr.vmem [resolvable:$true] %s15
      %21 = dma.hbm_to_vmem [thread:$0]  %s1, 768, %s16, [#allocation3], 128, 128, 8
    $region9: #{fwd.1} parent=1 // pred_fallthru
      _
    // Predicated region
    $region10: #{fwd.1} parent=1 // pred_check
      _
    $region11: #{fwd.1} parent=1 // pred_check_branch
      %23 = sbr.rel (0) target = $region13
    $region12: #{fwd.1} parent=1 // pred_region
      %24 = dma.done [#allocation3], 768
    $region13: #{fwd.1} parent=1 // pred_fallthru
      _
    %v26 = vld [vmem:[%s0] sm:$0x7]
    %v27 = vadd.f32 %v26, 1.0
    %v28 = vmul.f32 %v27, 7.5
    %v29 = vmax.f32 %v28, 0.0
    %v30 = vmin.f32 %v29, 15.0
    %v31 = vcvt.f32.s32.to.zero.pseudo %v30
    %v32 = vmul.u32 %v31, 16
    %v33 = vrot.slane %v31, 1
    %v34 = vadd.s32 %v32, %v33
    %v35 = vlaneseq
    %v36 = vshrl.u32 %v35, 7
    %v37 = vadd.s32 %v36, 8
    %v38 = vadd.s32 %v36, 16
    %v39 = vadd.s32 %v36, 24
    %v40 = vadd.s32 %v36, 32
    %v41 = vadd.s32 %v36, 40
    %v42 = vadd.s32 %v36, 48
    %v43 = vadd.s32 %v36, 56
    %v44 = vadd.s32 %v36, 64
    %v45 = vadd.s32 %v36, 72
    %v46 = vadd.s32 %v36, 80
    %v47 = vadd.s32 %v36, 88
    %v48 = vadd.s32 %v36, 96
    %v49 = vadd.s32 %v36, 104
    %v50 = vadd.s32 %v36, 112
    %v51 = vadd.s32 %v36, 120
    %v52 = vadd.s32 %v36, 128
    %v53 = vadd.s32 %v36, 136
    %v54 = vadd.s32 %v36, 144
    %v55 = vadd.s32 %v36, 152
    %v56 = vadd.s32 %v36, 160
    %v57 = vadd.s32 %v36, 168
    %v58 = vadd.s32 %v36, 176
    %v59 = vadd.s32 %v36, 184
    %v60 = vadd.s32 %v36, 192
    %v61 = vadd.s32 %v36, 200
    %v62 = vadd.s32 %v36, 208
    %v63 = vadd.s32 %v36, 216
    %v64 = vadd.s32 %v36, 224
    %v65 = vadd.s32 %v36, 232
    %v66 = vadd.s32 %v36, 240
    %v67 = vadd.s32 %v36, 248
    %v68 = vlaneseq
    %v69 = vshrl.u32 %v68, 7
    %v70 = vsub.s32 0, %v69
    %v71 = vrot.slane %v34, %v70
    %vm72 = vcmp.eq.s32.totalorder %v36, %v71
    %vm73 = vcmp.eq.s32.totalorder %v37, %v71
    %vm74 = vcmp.eq.s32.totalorder %v38, %v71
    %vm75 = vcmp.eq.s32.totalorder %v39, %v71
    %vm76 = vcmp.eq.s32.totalorder %v40, %v71
    %vm77 = vcmp.eq.s32.totalorder %v41, %v71
    %vm78 = vcmp.eq.s32.totalorder %v42, %v71
    %vm79 = vcmp.eq.s32.totalorder %v43, %v71
    %vm80 = vcmp.eq.s32.totalorder %v44, %v71
    %vm81 = vcmp.eq.s32.totalorder %v45, %v71
    %vm82 = vcmp.eq.s32.totalorder %v46, %v71
    %vm83 = vcmp.eq.s32.totalorder %v47, %v71
    %vm84 = vcmp.eq.s32.totalorder %v48, %v71
    %vm85 = vcmp.eq.s32.totalorder %v49, %v71
    %vm86 = vcmp.eq.s32.totalorder %v50, %v71
    %vm87 = vcmp.eq.s32.totalorder %v51, %v71
    %vm88 = vcmp.eq.s32.totalorder %v52, %v71
    %vm89 = vcmp.eq.s32.totalorder %v53, %v71
    %vm90 = vcmp.eq.s32.totalorder %v54, %v71
    %vm91 = vcmp.eq.s32.totalorder %v55, %v71
    %vm92 = vcmp.eq.s32.totalorder %v56, %v71
    %vm93 = vcmp.eq.s32.totalorder %v57, %v71
    %vm94 = vcmp.eq.s32.totalorder %v58, %v71
    %vm95 = vcmp.eq.s32.totalorder %v59, %v71
    %vm96 = vcmp.eq.s32.totalorder %v60, %v71
    %vm97 = vcmp.eq.s32.totalorder %v61, %v71
    %vm98 = vcmp.eq.s32.totalorder %v62, %v71
    %vm99 = vcmp.eq.s32.totalorder %v63, %v71
    %vm100 = vcmp.eq.s32.totalorder %v64, %v71
    %vm101 = vcmp.eq.s32.totalorder %v65, %v71
    %vm102 = vcmp.eq.s32.totalorder %v66, %v71
    %vm103 = vcmp.eq.s32.totalorder %v67, %v71
    %v104 = vsel %vm72, 1, 0
    %v105 = vsel %vm73, 1, 0
    %v106 = vsel %vm74, 1, 0
    %v107 = vsel %vm75, 1, 0
    %v108 = vsel %vm76, 1, 0
    %v109 = vsel %vm77, 1, 0
    %v110 = vsel %vm78, 1, 0
    %v111 = vsel %vm79, 1, 0
    %v112 = vsel %vm80, 1, 0
    %v113 = vsel %vm81, 1, 0
    %v114 = vsel %vm82, 1, 0
    %v115 = vsel %vm83, 1, 0
    %v116 = vsel %vm84, 1, 0
    %v117 = vsel %vm85, 1, 0
    %v118 = vsel %vm86, 1, 0
    %v119 = vsel %vm87, 1, 0
    %v120 = vsel %vm88, 1, 0
    %v121 = vsel %vm89, 1, 0
    %v122 = vsel %vm90, 1, 0
    %v123 = vsel %vm91, 1, 0
    %v124 = vsel %vm92, 1, 0
    %v125 = vsel %vm93, 1, 0
    %v126 = vsel %vm94, 1, 0
    %v127 = vsel %vm95, 1, 0
    %v128 = vsel %vm96, 1, 0
    %v129 = vsel %vm97, 1, 0
    %v130 = vsel %vm98, 1, 0
    %v131 = vsel %vm99, 1, 0
    %v132 = vsel %vm100, 1, 0
    %v133 = vsel %vm101, 1, 0
    %v134 = vsel %vm102, 1, 0
    %v135 = vsel %vm103, 1, 0
    %v136 = vcvt.s32.f32 %v104
    %v137 = vcvt.s32.f32 %v105
    %v138 = vcvt.s32.f32 %v106
    %v139 = vcvt.s32.f32 %v107
    %v140 = vcvt.s32.f32 %v108
    %v141 = vcvt.s32.f32 %v109
    %v142 = vcvt.s32.f32 %v110
    %v143 = vcvt.s32.f32 %v111
    %v144 = vcvt.s32.f32 %v112
    %v145 = vcvt.s32.f32 %v113
    %v146 = vcvt.s32.f32 %v114
    %v147 = vcvt.s32.f32 %v115
    %v148 = vcvt.s32.f32 %v116
    %v149 = vcvt.s32.f32 %v117
    %v150 = vcvt.s32.f32 %v118
    %v151 = vcvt.s32.f32 %v119
    %v152 = vcvt.s32.f32 %v120
    %v153 = vcvt.s32.f32 %v121
    %v154 = vcvt.s32.f32 %v122
    %v155 = vcvt.s32.f32 %v123
    %v156 = vcvt.s32.f32 %v124
    %v157 = vcvt.s32.f32 %v125
    %v158 = vcvt.s32.f32 %v126
    %v159 = vcvt.s32.f32 %v127
    %v160 = vcvt.s32.f32 %v128
    %v161 = vcvt.s32.f32 %v129
    %v162 = vcvt.s32.f32 %v130
    %v163 = vcvt.s32.f32 %v131
    %v164 = vcvt.s32.f32 %v132
    %v165 = vcvt.s32.f32 %v133
    %v166 = vcvt.s32.f32 %v134
    %v167 = vcvt.s32.f32 %v135
    %v168 = vpack.c.bf16 %v137, %v136
    %v169 = vpack.c.bf16 %v139, %v138
    %v170 = vpack.c.bf16 %v141, %v140
    %v171 = vpack.c.bf16 %v143, %v142
    %v172 = vpack.c.bf16 %v145, %v144
    %v173 = vpack.c.bf16 %v147, %v146
    %v174 = vpack.c.bf16 %v149, %v148
    %v175 = vpack.c.bf16 %v151, %v150
    %v176 = vpack.c.bf16 %v153, %v152
    %v177 = vpack.c.bf16 %v155, %v154
    %v178 = vpack.c.bf16 %v157, %v156
    %v179 = vpack.c.bf16 %v159, %v158
    %v180 = vpack.c.bf16 %v161, %v160
    %v181 = vpack.c.bf16 %v163, %v162
    %v182 = vpack.c.bf16 %v165, %v164
    %v183 = vpack.c.bf16 %v167, %v166
    %v184 = vld [vmem:[#allocation2] sm:$0xff]
    %v185 = vld [vmem:[#allocation2 + $0x8] sm:$0xff]
    %v186 = vld [vmem:[#allocation2 + $0x10] sm:$0xff]
    %v187 = vld [vmem:[#allocation2 + $0x18] sm:$0xff]
    %v188 = vld [vmem:[#allocation2 + $0x20] sm:$0xff]
    %v189 = vld [vmem:[#allocation2 + $0x28] sm:$0xff]
    %v196 = vunpack.c.l.b16 %v184
    %v197 = vunpack.c.h.b16 %v184
    %v198 = vunpack.c.l.b16 %v185
    %v199 = vunpack.c.h.b16 %v185
    %v200 = vunpack.c.l.b16 %v186
    %v201 = vunpack.c.h.b16 %v186
    %v202 = vunpack.c.l.b16 %v187
    %v203 = vunpack.c.h.b16 %v187
    %v204 = vunpack.c.l.b16 %v188
    %v205 = vunpack.c.h.b16 %v188
    %v206 = vunpack.c.l.b16 %v189
    %v207 = vunpack.c.h.b16 %v189
    %v208 = vpack.c.b16 %v198, %v196
    %v209 = vpack.c.b16 %v199, %v197
    %v210 = vpack.c.b16 %v202, %v200
    %v211 = vpack.c.b16 %v203, %v201
    %v212 = vpack.c.b16 %v206, %v204
    %v213 = vpack.c.b16 %v207, %v205
    %220 = vmatprep.subr.bf16.mxu0 0
    %221 = vmatpush1.bf16.msra.mxu0 %v175
    %222 = vmatprep.subr.bf16.mxu0 0
    %223 = vmatpush1.bf16.msra.mxu0 %v174
    %224 = vmatprep.subr.bf16.mxu0 0
    %225 = vmatpush1.bf16.msra.mxu0 %v173
    %226 = vmatprep.subr.bf16.mxu0 0
    %227 = vmatpush1.bf16.msra.mxu0 %v172
    %228 = vmatprep.subr.bf16.mxu0 0
    %229 = vmatpush1.bf16.msra.mxu0 %v171
    %230 = vmatprep.subr.bf16.mxu0 0
    %231 = vmatpush1.bf16.msra.mxu0 %v170
    %232 = vmatprep.subr.bf16.mxu0 0
    %233 = vmatpush1.bf16.msra.mxu0 %v169
    %234 = vmatprep.subr.bf16.mxu0 0
    %235 = vmatpush1.bf16.msra.mxu0 %v168
    %236 = vmatprep.subr.bf16.mxu0 0
    %237 = vmatpush2.bf16.msra.mxu0 %v183
    %238 = vmatprep.subr.bf16.mxu0 0
    %239 = vmatpush2.bf16.msra.mxu0 %v182
    %240 = vmatprep.subr.bf16.mxu0 0
    %241 = vmatpush2.bf16.msra.mxu0 %v181
    %242 = vmatprep.subr.bf16.mxu0 0
    %243 = vmatpush2.bf16.msra.mxu0 %v180
    %244 = vmatprep.subr.bf16.mxu0 0
    %245 = vmatpush2.bf16.msra.mxu0 %v179
    %246 = vmatprep.subr.bf16.mxu0 0
    %247 = vmatpush2.bf16.msra.mxu0 %v178
    %248 = vmatprep.subr.bf16.mxu0 0
    %249 = vmatpush2.bf16.msra.mxu0 %v177
    %250 = vmatprep.subr.bf16.mxu0 0
    %251 = vmatpush2.bf16.msra.mxu0 %v176
    %252 = vmatprep.mubr.bf16.mxu0 %v209
    %253 = vmatmul.mubr.bf16.gmra.mxu0 %v208
    %v254 = vpop.f32.mrf.mxu0
    %v255 = vadd.f32 0.0, %v254
    %v256 = vpop.f32.mrf.mxu0
    %v257 = vpop.f32.mrf.mxu0
    %v258 = vadd.f32 0.0, %v257
    %v259 = vpop.f32.mrf.mxu0
    %260 = vmatprep.mubr.bf16.mxu0 %v211
    %261 = vmatmul.mubr.bf16.gmra.mxu0 %v210
    %v262 = vpop.f32.mrf.mxu0
    %v263 = vadd.f32 0.0, %v262
    %v264 = vpop.f32.mrf.mxu0
    %v265 = vpop.f32.mrf.mxu0
    %v266 = vadd.f32 0.0, %v265
    %v267 = vpop.f32.mrf.mxu0
    %268 = vmatprep.mubr.bf16.mxu0 %v213
    %269 = vmatmul.mubr.bf16.gmra.mxu0 %v212
    %v270 = vpop.f32.mrf.mxu0
    %v271 = vadd.f32 0.0, %v270
    %v272 = vpop.f32.mrf.mxu0
    %v273 = vpop.f32.mrf.mxu0
    %v274 = vadd.f32 0.0, %v273
    %v275 = vpop.f32.mrf.mxu0
    %276 = vdwg.mxu0
    %v277 = vadd.f32 %v255, %v263
    %v278 = vadd.f32 %v258, %v266
    %v279 = vadd.f32 %v277, %v271
    %v280 = vadd.f32 %v278, %v274
    %v281 = vlaneseq
    %v282 = vshrl.u32 %v281, 7
    %v283 = vsub.s32 2, %v282
    %v284 = vrot.slane %v31, %v283
    %vm285 = vcmp.eq.s32.totalorder %v36, %v284
    %vm286 = vcmp.eq.s32.totalorder %v37, %v284
    %v287 = vsel %vm285, %v279, 0.0
    %v288 = vsel %vm286, %v280, 0.0
    %v289 = vadd.f32 %v287, %v288
    %v290 = vrot.slane %v289, 4
    %v291 = vadd.f32 %v289, %v290
    %v292 = vrot.slane %v291, 2
    %v293 = vadd.f32 %v291, %v292
    %v294 = vrot.slane %v293, 1
    %v295 = vadd.f32 %v293, %v294
    %296 = vst [vmem:[%s2] sm:$0x1] %v295
    // Predicated region
    $region14: #{fwd.1} parent=1 // pred_check
      _
    $region15: #{fwd.1} parent=1 // pred_check_branch
      %298 = sbr.rel (0) target = $region17
    $region16: #{fwd.1} parent=1 // pred_region
      _
    $region17: #{fwd.1} parent=1 // pred_fallthru
      _
    // Predicated region
    $region18: #{fwd.1} parent=1 // pred_check
      _
    $region19: #{fwd.1} parent=1 // pred_check_branch
      %300 = sbr.rel (0) target = $region21
    $region20: #{fwd.1} parent=1 // pred_region
      _
    $region21: #{fwd.1} parent=1 // pred_fallthru
      _
    %301 = vsyncpa [#allocation3], 1

</llo_original>
